<compile_context>
chip_gen: v7x
topology: tpu7x:2x2x1
jax: 0.10.0
libtpu: 0.0.40
codegen_flags: <defaults>
</compile_context>

<pallas_src>
import jax
import jax.numpy as jnp
from jax.experimental import pallas as pl
from jax.experimental.pallas import tpu as pltpu


def conv1x1_relu_kernel(x_ref, w_ref, b_ref, o_ref):
    # x_ref: (1, Cin, t_s)   w_ref: (Cout, Cin)   b_ref: (Cout, 1)
    # o_ref: (1, Cout, t_s)
    cin = x_ref.shape[1]
    w = w_ref[...]                     # (Cout, Cin)
    b = b_ref[...]                     # (Cout, 1)

    # Cin unrolled VPU FMAs instead of a <1%-utilized MXU matmul (K=3, M=16).
    acc = None
    for c in range(cin):
        xc = x_ref[0, c : c + 1, :]    # (1, t_s)   sublane-broadcast source
        term = w[:, c : c + 1] * xc    # (Cout,1)*(1,t_s) -> (Cout, t_s)
        acc = term if acc is None else acc + term

    acc = acc + b                      # bias per sublane (lane-broadcast)
    o_ref[0] = jnp.maximum(acc, 0.0).astype(o_ref.dtype)


def conv1x1_relu(x_nchw, weight, bias, *, spatial_tile=8192):
    """1x1 conv + ReLU, NCHW in / NCHW out.

    x_nchw: (N, Cin, H, W) float32
    weight: (Cout, Cin, 1, 1) or (Cout, Cin) float32
    bias:   (Cout,) float32
    returns (N, Cout, H, W) float32
    """
    N, Cin, H, W = x_nchw.shape
    Cout = weight.shape[0]
    S = H * W

    # Lane-aligned spatial tile (multiple of 128), big enough that small
    # inputs run in a single grid step, capped at the (padded) spatial size.
    LANE = 128
    s_aligned = pl.cdiv(S, LANE) * LANE
    t_s = min(spatial_tile, s_aligned)
    t_s = max(LANE, (t_s // LANE) * LANE)
    s_pad = pl.cdiv(s_aligned, t_s) * t_s

    # Free reshape from NCHW.
    x_3d = x_nchw.reshape(N, Cin, S)
    if s_pad != S:
        # TODO(synk): for non-128-multiple H*W, replace this wrapper-side
        # pad/slice (extra HBM passes) with an in-kernel masked tail store.
        x_3d = jnp.pad(x_3d, ((0, 0), (0, 0), (0, s_pad - S)))

    w_mat = weight.reshape(Cout, Cin).astype(jnp.float32)
    b_mat = bias.reshape(Cout, 1).astype(jnp.float32)

    grid = (N, s_pad // t_s)

    out_3d = pl.pallas_call(
        conv1x1_relu_kernel,
        out_shape=jax.ShapeDtypeStruct((N, Cout, s_pad), jnp.float32),
        grid_spec=pltpu.PrefetchScalarGridSpec(
            num_scalar_prefetch=0,
            grid=grid,
            in_specs=[
                pl.BlockSpec((1, Cin, t_s), lambda n, s: (n, 0, s)),  # x tile
                pl.BlockSpec((Cout, Cin), lambda n, s: (0, 0)),       # weight (resident)
                pl.BlockSpec((Cout, 1), lambda n, s: (0, 0)),         # bias (resident)
            ],
            out_specs=pl.BlockSpec((1, Cout, t_s), lambda n, s: (n, 0, s)),
        ),
        compiler_params=pltpu.CompilerParams(
            dimension_semantics=("parallel", "parallel"),
        ),
    )(x_3d, w_mat, b_mat)

    if s_pad != S:
        out_3d = out_3d[:, :, :S]
    return out_3d.reshape(N, Cout, H, W)


if __name__ == "__main__":
    key = jax.random.PRNGKey(0)
    kx, kw, kb = jax.random.split(key, 3)

    # Shapes implied by the module: Conv2d(3, 16, 1) on a (1, 3, 64, 64) input.
    N, Cin, H, W = 1, 3, 64, 64
    Cout = 16

    x = jax.random.normal(kx, (N, Cin, H, W), dtype=jnp.float32)
    weight = jax.random.normal(kw, (Cout, Cin, 1, 1), dtype=jnp.float32) * 0.1
    bias = jax.random.normal(kb, (Cout,), dtype=jnp.float32) * 0.1

    out = conv1x1_relu(x, weight, bias)
    out = jax.block_until_ready(out)

    # Reference: 1x1 conv == per-pixel channel matmul, then ReLU.
    ref = jnp.maximum(
        jnp.einsum("nchw,oc->nohw", x, weight.reshape(Cout, Cin))
        + bias[None, :, None, None],
        0.0,
    )
    assert out.shape == (N, Cout, H, W)
    assert jnp.allclose(out, ref, atol=1e-5, rtol=1e-5)

    print("KERNEL_OK")
</pallas_src>

<mosaic_0001>
module attributes {stable_mosaic.version = 11 : i64} {
  func.func @conv1x1_relu_kernel(%arg0: i32, %arg1: i32, %arg2: memref<1x3x4096xf32, #tpu.memory_space<vmem>>, %arg3: memref<16x3xf32, #tpu.memory_space<vmem>>, %arg4: memref<16x1xf32, #tpu.memory_space<vmem>>, %arg5: memref<1x16x4096xf32, #tpu.memory_space<vmem>>) attributes {dimension_semantics = [#tpu.dimension_semantics<parallel>, #tpu.dimension_semantics<parallel>], iteration_bounds = array<i64: 1, 1>, scalar_prefetch = 0 : i64, scratch_operands = 0 : i64, tpu.core_type = #tpu.core_type<tc>, window_params = [{transform_indices = @transform_0, window_bounds = array<i64: 1, 3, 4096>}, {pipeline_mode = #tpu.pipeline_mode<synchronous>, transform_indices = @transform_1, window_bounds = array<i64: 16, 3>}, {pipeline_mode = #tpu.pipeline_mode<synchronous>, transform_indices = @transform_2, window_bounds = array<i64: 16, 1>}, {transform_indices = @transform_3, window_bounds = array<i64: 1, 16, 4096>}]} {
    %c0 = arith.constant 0 : index
    %c0_0 = arith.constant 0 : index
    %0 = vector.load %arg3[%c0, %c0_0] : memref<16x3xf32, #tpu.memory_space<vmem>>, vector<16x3xf32>
    %c0_1 = arith.constant 0 : index
    %c0_2 = arith.constant 0 : index
    %1 = vector.load %arg4[%c0_1, %c0_2] : memref<16x1xf32, #tpu.memory_space<vmem>>, vector<16x1xf32>
    %c0_3 = arith.constant 0 : index
    %c0_4 = arith.constant 0 : index
    %c0_5 = arith.constant 0 : index
    %2 = vector.load %arg2[%c0_3, %c0_4, %c0_5] : memref<1x3x4096xf32, #tpu.memory_space<vmem>>, vector<1x1x4096xf32>
    %3 = vector.shape_cast %2 : vector<1x1x4096xf32> to vector<1x4096xf32>
    %4 = vector.extract_strided_slice %0 {offsets = [0, 0], sizes = [16, 1], strides = [1, 1]} : vector<16x3xf32> to vector<16x1xf32>
    %5 = vector.broadcast %4 : vector<16x1xf32> to vector<16x4096xf32>
    %6 = vector.broadcast %3 : vector<1x4096xf32> to vector<16x4096xf32>
    %7 = arith.mulf %5, %6 : vector<16x4096xf32>
    %c0_6 = arith.constant 0 : index
    %c1 = arith.constant 1 : index
    %c0_7 = arith.constant 0 : index
    %8 = vector.load %arg2[%c0_6, %c1, %c0_7] : memref<1x3x4096xf32, #tpu.memory_space<vmem>>, vector<1x1x4096xf32>
    %9 = vector.shape_cast %8 : vector<1x1x4096xf32> to vector<1x4096xf32>
    %10 = vector.extract_strided_slice %0 {offsets = [0, 1], sizes = [16, 1], strides = [1, 1]} : vector<16x3xf32> to vector<16x1xf32>
    %11 = vector.broadcast %10 : vector<16x1xf32> to vector<16x4096xf32>
    %12 = vector.broadcast %9 : vector<1x4096xf32> to vector<16x4096xf32>
    %13 = arith.mulf %11, %12 : vector<16x4096xf32>
    %14 = arith.addf %7, %13 : vector<16x4096xf32>
    %c0_8 = arith.constant 0 : index
    %c2 = arith.constant 2 : index
    %c0_9 = arith.constant 0 : index
    %15 = vector.load %arg2[%c0_8, %c2, %c0_9] : memref<1x3x4096xf32, #tpu.memory_space<vmem>>, vector<1x1x4096xf32>
    %16 = vector.shape_cast %15 : vector<1x1x4096xf32> to vector<1x4096xf32>
    %17 = vector.extract_strided_slice %0 {offsets = [0, 2], sizes = [16, 1], strides = [1, 1]} : vector<16x3xf32> to vector<16x1xf32>
    %18 = vector.broadcast %17 : vector<16x1xf32> to vector<16x4096xf32>
    %19 = vector.broadcast %16 : vector<1x4096xf32> to vector<16x4096xf32>
    %20 = arith.mulf %18, %19 : vector<16x4096xf32>
    %21 = arith.addf %14, %20 : vector<16x4096xf32>
    %22 = vector.broadcast %1 : vector<16x1xf32> to vector<16x4096xf32>
    %23 = arith.addf %21, %22 : vector<16x4096xf32>
    %cst = arith.constant 0.000000e+00 : f32
    %24 = vector.broadcast %cst : f32 to vector<16x4096xf32>
    %25 = arith.maximumf %23, %24 : vector<16x4096xf32>
    %c0_10 = arith.constant 0 : index
    %c0_11 = arith.constant 0 : index
    %c0_12 = arith.constant 0 : index
    %26 = vector.load %arg5[%c0_10, %c0_11, %c0_12] : memref<1x16x4096xf32, #tpu.memory_space<vmem>>, vector<1x16x4096xf32>
    %27 = vector.shape_cast %26 : vector<1x16x4096xf32> to vector<16x4096xf32>
    %28 = vector.shape_cast %25 : vector<16x4096xf32> to vector<1x16x4096xf32>
    tpu.vector_store %arg5[%c0_10, %c0_11, %c0_12], %28 {strides = array<i32>} : memref<1x16x4096xf32, #tpu.memory_space<vmem>>, vector<1x16x4096xf32>,
    return
  }
  func.func @transform_0(%arg0: i32, %arg1: i32) -> (i32, i32, i32) {
    %c0_i32 = arith.constant 0 : i32
    %c0_i32_0 = arith.constant 0 : i32
    return %arg0, %c0_i32, %arg1 : i32, i32, i32
  }
  func.func @transform_1(%arg0: i32, %arg1: i32) -> (i32, i32) {
    %c0_i32 = arith.constant 0 : i32
    %c0_i32_0 = arith.constant 0 : i32
    %c0_i32_1 = arith.constant 0 : i32
    return %c0_i32, %c0_i32_0 : i32, i32
  }
  func.func @transform_2(%arg0: i32, %arg1: i32) -> (i32, i32) {
    %c0_i32 = arith.constant 0 : i32
    %c0_i32_0 = arith.constant 0 : i32
    %c0_i32_1 = arith.constant 0 : i32
    return %c0_i32, %c0_i32_0 : i32, i32
  }
  func.func @transform_3(%arg0: i32, %arg1: i32) -> (i32, i32, i32) {
    %c0_i32 = arith.constant 0 : i32
    %c0_i32_0 = arith.constant 0 : i32
    return %arg0, %c0_i32, %arg1 : i32, i32, i32
  }
}

</mosaic_0001>

<llo_original>
// kernel: tpu_custom_call.1
$region0: #{tpu_custom_call.1}
  #allocation0 [shape = 'u32[]', space=smem, size = 0x4, offset = 0x4, fixed_abs, tag = 'smem constant byte address 0x4 - core index']
  #allocation1 [shape = 'u32[144,128]{1,0:T(1,128)}', space=vmem, size = 0x12000, scoped, tag = 'internal scratch']
  %s0 = inlined_call_operand.vmem [shape: f32[1,3,4096], index: 0, kind: input, shape index: {}]
  %s1 = inlined_call_operand.vmem [shape: f32[16,3], index: 1, kind: input, shape index: {}]
  %s2 = inlined_call_operand.vmem [shape: f32[16,1], index: 2, kind: input, shape index: {}]
  %s3 = inlined_call_operand.hbm [shape: f32[1,16,4096], index: 3, kind: output, shape index: {}]
  %s4 = sld [smem:[#allocation0]]
  $region22: #{tpu_custom_call.1} parent=0
    _
  %s6 = ssub.s32 1, %s4
  %s7 = scalar_select 0, %s6, %s4
  $region1: #{tpu_custom_call.1} parent=0
    #allocation2 [shape = 'u8[262144]{0}', space=vmem, size = 0x40000, scoped, tag = 'output window, operand 0, single buffered']
    #allocation3 [shape = 's32[1]{0}', space=sflag, size = 0x4, scoped, tag = 'scoped memory for tpu_custom_call.1']
    %8 = vsyncpa [#allocation3], 0
    // Predicated region
    $region2: #{tpu_custom_call.1} parent=1 // pred_check
      _
    $region3: #{tpu_custom_call.1} parent=1 // pred_check_branch
      %10 = sbr.rel (0) target = $region5
    $region4: #{tpu_custom_call.1} parent=1 // pred_region
      _
    $region5: #{tpu_custom_call.1} parent=1 // pred_fallthru
      _
    // Predicated region
    $region6: #{tpu_custom_call.1} parent=1 // pred_check
      _
    $region7: #{tpu_custom_call.1} parent=1 // pred_check_branch
      %12 = sbr.rel (0) target = $region9
    $region8: #{tpu_custom_call.1} parent=1 // pred_region
      _
    $region9: #{tpu_custom_call.1} parent=1 // pred_fallthru
      _
    // Predicated region
    $region10: #{tpu_custom_call.1} parent=1 // pred_check
      _
    $region11: #{tpu_custom_call.1} parent=1 // pred_check_branch
      %14 = sbr.rel (0) target = $region13
    $region12: #{tpu_custom_call.1} parent=1 // pred_region
      _
    $region13: #{tpu_custom_call.1} parent=1 // pred_fallthru
      _
    %v15 = vld [vmem:[%s1] sm:$0xff]
    %v16 = vld [vmem:[%s1 + $0x8] sm:$0xff]
    %v17 = vld [vmem:[%s2] sm:$0xff]
    %v18 = vld [vmem:[%s2 + $0x8] sm:$0xff]
    %v19 = vld [vmem:[%s0] ss:$4 sm:$0xff]
    %s20 = scalar_lea.vmem %s0, 32
    %v21 = vld [vmem:[%s20] ss:$4 sm:$0xff]
    %s22 = scalar_lea.vmem %s0, 64
    %v23 = vld [vmem:[%s22] ss:$4 sm:$0xff]
    %s24 = scalar_lea.vmem %s0, 96
    %v25 = vld [vmem:[%s24] ss:$4 sm:$0xff]
    %27 = vset.pattern.permute.xlu0 0
    %28 = vperm.xlu0 %27, %v15
    %v29 = vpop.permute.xlu0 %28
    %32 = vset.pattern.permute.xlu0 0
    %33 = vperm.xlu0 %32, %v16
    %v34 = vpop.permute.xlu0 %33
    %v40 = vlaneseq
    %v41 = vshrl.u32 %v40, 7
    %v42 = vsub.s32 0, %v41
    %v43 = vrot.slane %v19, %v42
    %v44 = vlaneseq
    %v45 = vshrl.u32 %v44, 7
    %v46 = vsub.s32 1, %v45
    %v47 = vrot.slane %v19, %v46
    %v48 = vlaneseq
    %v49 = vshrl.u32 %v48, 7
    %v50 = vsub.s32 2, %v49
    %v51 = vrot.slane %v19, %v50
    %v52 = vlaneseq
    %v53 = vshrl.u32 %v52, 7
    %v54 = vsub.s32 3, %v53
    %v55 = vrot.slane %v19, %v54
    %v56 = vlaneseq
    %v57 = vshrl.u32 %v56, 7
    %v58 = vsub.s32 4, %v57
    %v59 = vrot.slane %v19, %v58
    %v60 = vlaneseq
    %v61 = vshrl.u32 %v60, 7
    %v62 = vsub.s32 5, %v61
    %v63 = vrot.slane %v19, %v62
    %v64 = vlaneseq
    %v65 = vshrl.u32 %v64, 7
    %v66 = vsub.s32 6, %v65
    %v67 = vrot.slane %v19, %v66
    %v68 = vlaneseq
    %v69 = vshrl.u32 %v68, 7
    %v70 = vsub.s32 7, %v69
    %v71 = vrot.slane %v19, %v70
    %v72 = vlaneseq
    %v73 = vshrl.u32 %v72, 7
    %v74 = vsub.s32 0, %v73
    %v75 = vrot.slane %v21, %v74
    %v76 = vlaneseq
    %v77 = vshrl.u32 %v76, 7
    %v78 = vsub.s32 1, %v77
    %v79 = vrot.slane %v21, %v78
    %v80 = vlaneseq
    %v81 = vshrl.u32 %v80, 7
    %v82 = vsub.s32 2, %v81
    %v83 = vrot.slane %v21, %v82
    %v84 = vlaneseq
    %v85 = vshrl.u32 %v84, 7
    %v86 = vsub.s32 3, %v85
    %v87 = vrot.slane %v21, %v86
    %v88 = vlaneseq
    %v89 = vshrl.u32 %v88, 7
    %v90 = vsub.s32 4, %v89
    %v91 = vrot.slane %v21, %v90
    %v92 = vlaneseq
    %v93 = vshrl.u32 %v92, 7
    %v94 = vsub.s32 5, %v93
    %v95 = vrot.slane %v21, %v94
    %v96 = vlaneseq
    %v97 = vshrl.u32 %v96, 7
    %v98 = vsub.s32 6, %v97
    %v99 = vrot.slane %v21, %v98
    %v100 = vlaneseq
    %v101 = vshrl.u32 %v100, 7
    %v102 = vsub.s32 7, %v101
    %v103 = vrot.slane %v21, %v102
    %v104 = vlaneseq
    %v105 = vshrl.u32 %v104, 7
    %v106 = vsub.s32 0, %v105
    %v107 = vrot.slane %v23, %v106
    %v108 = vlaneseq
    %v109 = vshrl.u32 %v108, 7
    %v110 = vsub.s32 1, %v109
    %v111 = vrot.slane %v23, %v110
    %v112 = vlaneseq
    %v113 = vshrl.u32 %v112, 7
    %v114 = vsub.s32 2, %v113
    %v115 = vrot.slane %v23, %v114
    %v116 = vlaneseq
    %v117 = vshrl.u32 %v116, 7
    %v118 = vsub.s32 3, %v117
    %v119 = vrot.slane %v23, %v118
    %v120 = vlaneseq
    %v121 = vshrl.u32 %v120, 7
    %v122 = vsub.s32 4, %v121
    %v123 = vrot.slane %v23, %v122
    %v124 = vlaneseq
    %v125 = vshrl.u32 %v124, 7
    %v126 = vsub.s32 5, %v125
    %v127 = vrot.slane %v23, %v126
    %v128 = vlaneseq
    %v129 = vshrl.u32 %v128, 7
    %v130 = vsub.s32 6, %v129
    %v131 = vrot.slane %v23, %v130
    %v132 = vlaneseq
    %v133 = vshrl.u32 %v132, 7
    %v134 = vsub.s32 7, %v133
    %v135 = vrot.slane %v23, %v134
    %v136 = vlaneseq
    %v137 = vshrl.u32 %v136, 7
    %v138 = vsub.s32 0, %v137
    %v139 = vrot.slane %v25, %v138
    %v140 = vlaneseq
    %v141 = vshrl.u32 %v140, 7
    %v142 = vsub.s32 1, %v141
    %v143 = vrot.slane %v25, %v142
    %v144 = vlaneseq
    %v145 = vshrl.u32 %v144, 7
    %v146 = vsub.s32 2, %v145
    %v147 = vrot.slane %v25, %v146
    %v148 = vlaneseq
    %v149 = vshrl.u32 %v148, 7
    %v150 = vsub.s32 3, %v149
    %v151 = vrot.slane %v25, %v150
    %v152 = vlaneseq
    %v153 = vshrl.u32 %v152, 7
    %v154 = vsub.s32 4, %v153
    %v155 = vrot.slane %v25, %v154
    %v156 = vlaneseq
    %v157 = vshrl.u32 %v156, 7
    %v158 = vsub.s32 5, %v157
    %v159 = vrot.slane %v25, %v158
    %v160 = vlaneseq
    %v161 = vshrl.u32 %v160, 7
    %v162 = vsub.s32 6, %v161
    %v163 = vrot.slane %v25, %v162
    %v164 = vlaneseq
    %v165 = vshrl.u32 %v164, 7
    %v166 = vsub.s32 7, %v165
    %v167 = vrot.slane %v25, %v166
    %v200 = vmul.f32 %v29, %v43
    %v201 = vmul.f32 %v29, %v47
    %v202 = vmul.f32 %v29, %v51
    %v203 = vmul.f32 %v29, %v55
    %v204 = vmul.f32 %v29, %v59
    %v205 = vmul.f32 %v29, %v63
    %v206 = vmul.f32 %v29, %v67
    %v207 = vmul.f32 %v29, %v71
    %v208 = vmul.f32 %v29, %v75
    %v209 = vmul.f32 %v29, %v79
    %v210 = vmul.f32 %v29, %v83
    %v211 = vmul.f32 %v29, %v87
    %v212 = vmul.f32 %v29, %v91
    %v213 = vmul.f32 %v29, %v95
    %v214 = vmul.f32 %v29, %v99
    %v215 = vmul.f32 %v29, %v103
    %v216 = vmul.f32 %v29, %v107
    %v217 = vmul.f32 %v29, %v111
    %v218 = vmul.f32 %v29, %v115
    %v219 = vmul.f32 %v29, %v119
    %v220 = vmul.f32 %v29, %v123
    %v221 = vmul.f32 %v29, %v127
    %v222 = vmul.f32 %v29, %v131
    %v223 = vmul.f32 %v29, %v135
    %v224 = vmul.f32 %v29, %v139
    %v225 = vmul.f32 %v29, %v143
    %v226 = vmul.f32 %v29, %v147
    %v227 = vmul.f32 %v29, %v151
    %v228 = vmul.f32 %v29, %v155
    %v229 = vmul.f32 %v29, %v159
    %v230 = vmul.f32 %v29, %v163
    %v231 = vmul.f32 %v29, %v167
    %v232 = vmul.f32 %v34, %v43
    %v233 = vmul.f32 %v34, %v47
    %v234 = vmul.f32 %v34, %v51
    %v235 = vmul.f32 %v34, %v55
    %v236 = vmul.f32 %v34, %v59
    %v237 = vmul.f32 %v34, %v63
    %v238 = vmul.f32 %v34, %v67
    %v239 = vmul.f32 %v34, %v71
    %v240 = vmul.f32 %v34, %v75
    %v241 = vmul.f32 %v34, %v79
    %v242 = vmul.f32 %v34, %v83
    %v243 = vmul.f32 %v34, %v87
    %v244 = vmul.f32 %v34, %v91
    %v245 = vmul.f32 %v34, %v95
    %v246 = vmul.f32 %v34, %v99
    %v247 = vmul.f32 %v34, %v103
    %v248 = vmul.f32 %v34, %v107
    %v249 = vmul.f32 %v34, %v111
    %v250 = vmul.f32 %v34, %v115
    %v251 = vmul.f32 %v34, %v119
    %v252 = vmul.f32 %v34, %v123
    %v253 = vmul.f32 %v34, %v127
    %v254 = vmul.f32 %v34, %v131
    %v255 = vmul.f32 %v34, %v135
    %v256 = vmul.f32 %v34, %v139
    %v257 = vmul.f32 %v34, %v143
    %v258 = vmul.f32 %v34, %v147
    %v259 = vmul.f32 %v34, %v151
    %v260 = vmul.f32 %v34, %v155
    %v261 = vmul.f32 %v34, %v159
    %v262 = vmul.f32 %v34, %v163
    %v263 = vmul.f32 %v34, %v167
    %s264 = scalar_lea.vmem %s0, 1
    %v265 = vld [vmem:[%s264] ss:$4 sm:$0xff]
    %s266 = scalar_lea.vmem %s0, 33
    %v267 = vld [vmem:[%s266] ss:$4 sm:$0xff]
    %s268 = scalar_lea.vmem %s0, 65
    %v269 = vld [vmem:[%s268] ss:$4 sm:$0xff]
    %s270 = scalar_lea.vmem %s0, 97
    %v271 = vld [vmem:[%s270] ss:$4 sm:$0xff]
    %272 = vset.pattern.permute.xlu0 1
    %273 = vperm.xlu0 %272, %v15
    %v274 = vpop.permute.xlu0 %273
    %276 = vset.pattern.permute.xlu0 1
    %277 = vperm.xlu0 %276, %v16
    %v278 = vpop.permute.xlu0 %277
    %v284 = vlaneseq
    %v285 = vshrl.u32 %v284, 7
    %v286 = vsub.s32 0, %v285
    %v287 = vrot.slane %v265, %v286
    %v288 = vlaneseq
    %v289 = vshrl.u32 %v288, 7
    %v290 = vsub.s32 1, %v289
    %v291 = vrot.slane %v265, %v290
    %v292 = vlaneseq
    %v293 = vshrl.u32 %v292, 7
    %v294 = vsub.s32 2, %v293
    %v295 = vrot.slane %v265, %v294
    %v296 = vlaneseq
    %v297 = vshrl.u32 %v296, 7
    %v298 = vsub.s32 3, %v297
    %v299 = vrot.slane %v265, %v298
    %v300 = vlaneseq
    %v301 = vshrl.u32 %v300, 7
    %v302 = vsub.s32 4, %v301
    %v303 = vrot.slane %v265, %v302
    %v304 = vlaneseq
    %v305 = vshrl.u32 %v304, 7
    %v306 = vsub.s32 5, %v305
    %v307 = vrot.slane %v265, %v306
    %v308 = vlaneseq
    %v309 = vshrl.u32 %v308, 7
    %v310 = vsub.s32 6, %v309
    %v311 = vrot.slane %v265, %v310
    %v312 = vlaneseq
    %v313 = vshrl.u32 %v312, 7
    %v314 = vsub.s32 7, %v313
    %v315 = vrot.slane %v265, %v314
    %v316 = vlaneseq
    %v317 = vshrl.u32 %v316, 7
    %v318 = vsub.s32 0, %v317
    %v319 = vrot.slane %v267, %v318
    %v320 = vlaneseq
    %v321 = vshrl.u32 %v320, 7
    %v322 = vsub.s32 1, %v321
    %v323 = vrot.slane %v267, %v322
    %v324 = vlaneseq
    %v325 = vshrl.u32 %v324, 7
    %v326 = vsub.s32 2, %v325
    %v327 = vrot.slane %v267, %v326
    %v328 = vlaneseq
    %v329 = vshrl.u32 %v328, 7
    %v330 = vsub.s32 3, %v329
    %v331 = vrot.slane %v267, %v330
    %v332 = vlaneseq
    %v333 = vshrl.u32 %v332, 7
    %v334 = vsub.s32 4, %v333
    %v335 = vrot.slane %v267, %v334
    %v336 = vlaneseq
    %v337 = vshrl.u32 %v336, 7
    %v338 = vsub.s32 5, %v337
    %v339 = vrot.slane %v267, %v338
    %v340 = vlaneseq
    %v341 = vshrl.u32 %v340, 7
    %v342 = vsub.s32 6, %v341
    %v343 = vrot.slane %v267, %v342
    %v344 = vlaneseq
    %v345 = vshrl.u32 %v344, 7
    %v346 = vsub.s32 7, %v345
    %v347 = vrot.slane %v267, %v346
    %v348 = vlaneseq
    %v349 = vshrl.u32 %v348, 7
    %v350 = vsub.s32 0, %v349
    %v351 = vrot.slane %v269, %v350
    %v352 = vlaneseq
    %v353 = vshrl.u32 %v352, 7
    %v354 = vsub.s32 1, %v353
    %v355 = vrot.slane %v269, %v354
    %v356 = vlaneseq
    %v357 = vshrl.u32 %v356, 7
    %v358 = vsub.s32 2, %v357
    %v359 = vrot.slane %v269, %v358
    %v360 = vlaneseq
    %v361 = vshrl.u32 %v360, 7
    %v362 = vsub.s32 3, %v361
    %v363 = vrot.slane %v269, %v362
    %v364 = vlaneseq
    %v365 = vshrl.u32 %v364, 7
    %v366 = vsub.s32 4, %v365
    %v367 = vrot.slane %v269, %v366
    %v368 = vlaneseq
    %v369 = vshrl.u32 %v368, 7
    %v370 = vsub.s32 5, %v369
    %v371 = vrot.slane %v269, %v370
    %v372 = vlaneseq
    %v373 = vshrl.u32 %v372, 7
    %v374 = vsub.s32 6, %v373
    %v375 = vrot.slane %v269, %v374
    %v376 = vlaneseq
    %v377 = vshrl.u32 %v376, 7
    %v378 = vsub.s32 7, %v377
    %v379 = vrot.slane %v269, %v378
    %v380 = vlaneseq
    %v381 = vshrl.u32 %v380, 7
    %v382 = vsub.s32 0, %v381
    %v383 = vrot.slane %v271, %v382
    %v384 = vlaneseq
    %v385 = vshrl.u32 %v384, 7
    %v386 = vsub.s32 1, %v385
    %v387 = vrot.slane %v271, %v386
    %v388 = vlaneseq
    %v389 = vshrl.u32 %v388, 7
    %v390 = vsub.s32 2, %v389
    %v391 = vrot.slane %v271, %v390
    %v392 = vlaneseq
    %v393 = vshrl.u32 %v392, 7
    %v394 = vsub.s32 3, %v393
    %v395 = vrot.slane %v271, %v394
    %v396 = vlaneseq
    %v397 = vshrl.u32 %v396, 7
    %v398 = vsub.s32 4, %v397
    %v399 = vrot.slane %v271, %v398
    %v400 = vlaneseq
    %v401 = vshrl.u32 %v400, 7
    %v402 = vsub.s32 5, %v401
    %v403 = vrot.slane %v271, %v402
    %v404 = vlaneseq
    %v405 = vshrl.u32 %v404, 7
    %v406 = vsub.s32 6, %v405
    %v407 = vrot.slane %v271, %v406
    %v408 = vlaneseq
    %v409 = vshrl.u32 %v408, 7
    %v410 = vsub.s32 7, %v409
    %v411 = vrot.slane %v271, %v410
    %v444 = vmul.f32 %v274, %v287
    %v445 = vmul.f32 %v274, %v291
    %v446 = vmul.f32 %v274, %v295
    %v447 = vmul.f32 %v274, %v299
    %v448 = vmul.f32 %v274, %v303
    %v449 = vmul.f32 %v274, %v307
    %v450 = vmul.f32 %v274, %v311
    %v451 = vmul.f32 %v274, %v315
    %v452 = vmul.f32 %v274, %v319
    %v453 = vmul.f32 %v274, %v323
    %v454 = vmul.f32 %v274, %v327
    %v455 = vmul.f32 %v274, %v331
    %v456 = vmul.f32 %v274, %v335
    %v457 = vmul.f32 %v274, %v339
    %v458 = vmul.f32 %v274, %v343
    %v459 = vmul.f32 %v274, %v347
    %v460 = vmul.f32 %v274, %v351
    %v461 = vmul.f32 %v274, %v355
    %v462 = vmul.f32 %v274, %v359
    %v463 = vmul.f32 %v274, %v363
    %v464 = vmul.f32 %v274, %v367
    %v465 = vmul.f32 %v274, %v371
    %v466 = vmul.f32 %v274, %v375
    %v467 = vmul.f32 %v274, %v379
    %v468 = vmul.f32 %v274, %v383
    %v469 = vmul.f32 %v274, %v387
    %v470 = vmul.f32 %v274, %v391
    %v471 = vmul.f32 %v274, %v395
    %v472 = vmul.f32 %v274, %v399
    %v473 = vmul.f32 %v274, %v403
    %v474 = vmul.f32 %v274, %v407
    %v475 = vmul.f32 %v274, %v411
    %v476 = vmul.f32 %v278, %v287
    %v477 = vmul.f32 %v278, %v291
    %v478 = vmul.f32 %v278, %v295
    %v479 = vmul.f32 %v278, %v299
    %v480 = vmul.f32 %v278, %v303
    %v481 = vmul.f32 %v278, %v307
    %v482 = vmul.f32 %v278, %v311
    %v483 = vmul.f32 %v278, %v315
    %v484 = vmul.f32 %v278, %v319
    %v485 = vmul.f32 %v278, %v323
    %v486 = vmul.f32 %v278, %v327
    %v487 = vmul.f32 %v278, %v331
    %v488 = vmul.f32 %v278, %v335
    %v489 = vmul.f32 %v278, %v339
    %v490 = vmul.f32 %v278, %v343
    %v491 = vmul.f32 %v278, %v347
    %v492 = vmul.f32 %v278, %v351
    %v493 = vmul.f32 %v278, %v355
    %v494 = vmul.f32 %v278, %v359
    %v495 = vmul.f32 %v278, %v363
    %v496 = vmul.f32 %v278, %v367
    %v497 = vmul.f32 %v278, %v371
    %v498 = vmul.f32 %v278, %v375
    %v499 = vmul.f32 %v278, %v379
    %v500 = vmul.f32 %v278, %v383
    %v501 = vmul.f32 %v278, %v387
    %v502 = vmul.f32 %v278, %v391
    %v503 = vmul.f32 %v278, %v395
    %v504 = vmul.f32 %v278, %v399
    %v505 = vmul.f32 %v278, %v403
    %v506 = vmul.f32 %v278, %v407
    %v507 = vmul.f32 %v278, %v411
    %v508 = vadd.f32 %v200, %v444
    %v509 = vadd.f32 %v201, %v445
    %v510 = vadd.f32 %v202, %v446
    %v511 = vadd.f32 %v203, %v447
    %v512 = vadd.f32 %v204, %v448
    %v513 = vadd.f32 %v205, %v449
    %v514 = vadd.f32 %v206, %v450
    %v515 = vadd.f32 %v207, %v451
    %v516 = vadd.f32 %v208, %v452
    %v517 = vadd.f32 %v209, %v453
    %v518 = vadd.f32 %v210, %v454
    %v519 = vadd.f32 %v211, %v455
    %v520 = vadd.f32 %v212, %v456
    %v521 = vadd.f32 %v213, %v457
    %v522 = vadd.f32 %v214, %v458
    %v523 = vadd.f32 %v215, %v459
    %v524 = vadd.f32 %v216, %v460
    %v525 = vadd.f32 %v217, %v461
    %v526 = vadd.f32 %v218, %v462
    %v527 = vadd.f32 %v219, %v463
    %v528 = vadd.f32 %v220, %v464
    %v529 = vadd.f32 %v221, %v465
    %v530 = vadd.f32 %v222, %v466
    %v531 = vadd.f32 %v223, %v467
    %v532 = vadd.f32 %v224, %v468
    %v533 = vadd.f32 %v225, %v469
    %v534 = vadd.f32 %v226, %v470
    %v535 = vadd.f32 %v227, %v471
    %v536 = vadd.f32 %v228, %v472
    %v537 = vadd.f32 %v229, %v473
    %v538 = vadd.f32 %v230, %v474
    %v539 = vadd.f32 %v231, %v475
    %v540 = vadd.f32 %v232, %v476
    %v541 = vadd.f32 %v233, %v477
    %v542 = vadd.f32 %v234, %v478
    %v543 = vadd.f32 %v235, %v479
    %v544 = vadd.f32 %v236, %v480
    %v545 = vadd.f32 %v237, %v481
    %v546 = vadd.f32 %v238, %v482
    %v547 = vadd.f32 %v239, %v483
    %v548 = vadd.f32 %v240, %v484
    %v549 = vadd.f32 %v241, %v485
    %v550 = vadd.f32 %v242, %v486
    %v551 = vadd.f32 %v243, %v487
    %v552 = vadd.f32 %v244, %v488
    %v553 = vadd.f32 %v245, %v489
    %v554 = vadd.f32 %v246, %v490
    %v555 = vadd.f32 %v247, %v491
    %v556 = vadd.f32 %v248, %v492
    %v557 = vadd.f32 %v249, %v493
    %v558 = vadd.f32 %v250, %v494
    %v559 = vadd.f32 %v251, %v495
    %v560 = vadd.f32 %v252, %v496
    %v561 = vadd.f32 %v253, %v497
    %v562 = vadd.f32 %v254, %v498
    %v563 = vadd.f32 %v255, %v499
    %v564 = vadd.f32 %v256, %v500
    %v565 = vadd.f32 %v257, %v501
    %v566 = vadd.f32 %v258, %v502
    %v567 = vadd.f32 %v259, %v503
    %v568 = vadd.f32 %v260, %v504
    %v569 = vadd.f32 %v261, %v505
    %v570 = vadd.f32 %v262, %v506
    %v571 = vadd.f32 %v263, %v507
    %s572 = scalar_lea.vmem %s0, 2
    %v573 = vld [vmem:[%s572] ss:$4 sm:$0xff]
    %s574 = scalar_lea.vmem %s0, 34
    %v575 = vld [vmem:[%s574] ss:$4 sm:$0xff]
    %s576 = scalar_lea.vmem %s0, 66
    %v577 = vld [vmem:[%s576] ss:$4 sm:$0xff]
    %s578 = scalar_lea.vmem %s0, 98
    %v579 = vld [vmem:[%s578] ss:$4 sm:$0xff]
    %580 = vset.pattern.permute.xlu0 2
    %581 = vperm.xlu0 %580, %v15
    %v582 = vpop.permute.xlu0 %581
    %584 = vset.pattern.permute.xlu0 2
    %585 = vperm.xlu0 %584, %v16
    %v586 = vpop.permute.xlu0 %585
    %v592 = vlaneseq
    %v593 = vshrl.u32 %v592, 7
    %v594 = vsub.s32 0, %v593
    %v595 = vrot.slane %v573, %v594
    %v596 = vlaneseq
    %v597 = vshrl.u32 %v596, 7
    %v598 = vsub.s32 1, %v597
    %v599 = vrot.slane %v573, %v598
    %v600 = vlaneseq
    %v601 = vshrl.u32 %v600, 7
    %v602 = vsub.s32 2, %v601
    %v603 = vrot.slane %v573, %v602
    %v604 = vlaneseq
    %v605 = vshrl.u32 %v604, 7
    %v606 = vsub.s32 3, %v605
    %v607 = vrot.slane %v573, %v606
    %v608 = vlaneseq
    %v609 = vshrl.u32 %v608, 7
    %v610 = vsub.s32 4, %v609
    %v611 = vrot.slane %v573, %v610
    %v612 = vlaneseq
    %v613 = vshrl.u32 %v612, 7
    %v614 = vsub.s32 5, %v613
    %v615 = vrot.slane %v573, %v614
    %v616 = vlaneseq
    %v617 = vshrl.u32 %v616, 7
    %v618 = vsub.s32 6, %v617
    %v619 = vrot.slane %v573, %v618
    %v620 = vlaneseq
    %v621 = vshrl.u32 %v620, 7
    %v622 = vsub.s32 7, %v621
    %v623 = vrot.slane %v573, %v622
    %v624 = vlaneseq
    %v625 = vshrl.u32 %v624, 7
    %v626 = vsub.s32 0, %v625
    %v627 = vrot.slane %v575, %v626
    %v628 = vlaneseq
    %v629 = vshrl.u32 %v628, 7
    %v630 = vsub.s32 1, %v629
    %v631 = vrot.slane %v575, %v630
    %v632 = vlaneseq
    %v633 = vshrl.u32 %v632, 7
    %v634 = vsub.s32 2, %v633
    %v635 = vrot.slane %v575, %v634
    %v636 = vlaneseq
    %v637 = vshrl.u32 %v636, 7
    %v638 = vsub.s32 3, %v637
    %v639 = vrot.slane %v575, %v638
    %v640 = vlaneseq
    %v641 = vshrl.u32 %v640, 7
    %v642 = vsub.s32 4, %v641
    %v643 = vrot.slane %v575, %v642
    %v644 = vlaneseq
    %v645 = vshrl.u32 %v644, 7
    %v646 = vsub.s32 5, %v645
    %v647 = vrot.slane %v575, %v646
    %v648 = vlaneseq
    %v649 = vshrl.u32 %v648, 7
    %v650 = vsub.s32 6, %v649
    %v651 = vrot.slane %v575, %v650
    %v652 = vlaneseq
    %v653 = vshrl.u32 %v652, 7
    %v654 = vsub.s32 7, %v653
    %v655 = vrot.slane %v575, %v654
    %v656 = vlaneseq
    %v657 = vshrl.u32 %v656, 7
    %v658 = vsub.s32 0, %v657
    %v659 = vrot.slane %v577, %v658
    %v660 = vlaneseq
    %v661 = vshrl.u32 %v660, 7
    %v662 = vsub.s32 1, %v661
    %v663 = vrot.slane %v577, %v662
    %v664 = vlaneseq
    %v665 = vshrl.u32 %v664, 7
    %v666 = vsub.s32 2, %v665
    %v667 = vrot.slane %v577, %v666
    %v668 = vlaneseq
    %v669 = vshrl.u32 %v668, 7
    %v670 = vsub.s32 3, %v669
    %v671 = vrot.slane %v577, %v670
    %v672 = vlaneseq
    %v673 = vshrl.u32 %v672, 7
    %v674 = vsub.s32 4, %v673
    %v675 = vrot.slane %v577, %v674
    %v676 = vlaneseq
    %v677 = vshrl.u32 %v676, 7
    %v678 = vsub.s32 5, %v677
    %v679 = vrot.slane %v577, %v678
    %v680 = vlaneseq
    %v681 = vshrl.u32 %v680, 7
    %v682 = vsub.s32 6, %v681
    %v683 = vrot.slane %v577, %v682
    %v684 = vlaneseq
    %v685 = vshrl.u32 %v684, 7
    %v686 = vsub.s32 7, %v685
    %v687 = vrot.slane %v577, %v686
    %v688 = vlaneseq
    %v689 = vshrl.u32 %v688, 7
    %v690 = vsub.s32 0, %v689
    %v691 = vrot.slane %v579, %v690
    %v692 = vlaneseq
    %v693 = vshrl.u32 %v692, 7
    %v694 = vsub.s32 1, %v693
    %v695 = vrot.slane %v579, %v694
    %v696 = vlaneseq
    %v697 = vshrl.u32 %v696, 7
    %v698 = vsub.s32 2, %v697
    %v699 = vrot.slane %v579, %v698
    %v700 = vlaneseq
    %v701 = vshrl.u32 %v700, 7
    %v702 = vsub.s32 3, %v701
    %v703 = vrot.slane %v579, %v702
    %v704 = vlaneseq
    %v705 = vshrl.u32 %v704, 7
    %v706 = vsub.s32 4, %v705
    %v707 = vrot.slane %v579, %v706
    %v708 = vlaneseq
    %v709 = vshrl.u32 %v708, 7
    %v710 = vsub.s32 5, %v709
    %v711 = vrot.slane %v579, %v710
    %v712 = vlaneseq
    %v713 = vshrl.u32 %v712, 7
    %v714 = vsub.s32 6, %v713
    %v715 = vrot.slane %v579, %v714
    %v716 = vlaneseq
    %v717 = vshrl.u32 %v716, 7
    %v718 = vsub.s32 7, %v717
    %v719 = vrot.slane %v579, %v718
    %v752 = vmul.f32 %v582, %v595
    %v753 = vmul.f32 %v582, %v599
    %v754 = vmul.f32 %v582, %v603
    %v755 = vmul.f32 %v582, %v607
    %v756 = vmul.f32 %v582, %v611
    %v757 = vmul.f32 %v582, %v615
    %v758 = vmul.f32 %v582, %v619
    %v759 = vmul.f32 %v582, %v623
    %v760 = vmul.f32 %v582, %v627
    %v761 = vmul.f32 %v582, %v631
    %v762 = vmul.f32 %v582, %v635
    %v763 = vmul.f32 %v582, %v639
    %v764 = vmul.f32 %v582, %v643
    %v765 = vmul.f32 %v582, %v647
    %v766 = vmul.f32 %v582, %v651
    %v767 = vmul.f32 %v582, %v655
    %v768 = vmul.f32 %v582, %v659
    %v769 = vmul.f32 %v582, %v663
    %v770 = vmul.f32 %v582, %v667
    %v771 = vmul.f32 %v582, %v671
    %v772 = vmul.f32 %v582, %v675
    %v773 = vmul.f32 %v582, %v679
    %v774 = vmul.f32 %v582, %v683
    %v775 = vmul.f32 %v582, %v687
    %v776 = vmul.f32 %v582, %v691
    %v777 = vmul.f32 %v582, %v695
    %v778 = vmul.f32 %v582, %v699
    %v779 = vmul.f32 %v582, %v703
    %v780 = vmul.f32 %v582, %v707
    %v781 = vmul.f32 %v582, %v711
    %v782 = vmul.f32 %v582, %v715
    %v783 = vmul.f32 %v582, %v719
    %v784 = vmul.f32 %v586, %v595
    %v785 = vmul.f32 %v586, %v599
    %v786 = vmul.f32 %v586, %v603
    %v787 = vmul.f32 %v586, %v607
    %v788 = vmul.f32 %v586, %v611
    %v789 = vmul.f32 %v586, %v615
    %v790 = vmul.f32 %v586, %v619
    %v791 = vmul.f32 %v586, %v623
    %v792 = vmul.f32 %v586, %v627
    %v793 = vmul.f32 %v586, %v631
    %v794 = vmul.f32 %v586, %v635
    %v795 = vmul.f32 %v586, %v639
    %v796 = vmul.f32 %v586, %v643
    %v797 = vmul.f32 %v586, %v647
    %v798 = vmul.f32 %v586, %v651
    %v799 = vmul.f32 %v586, %v655
    %v800 = vmul.f32 %v586, %v659
    %v801 = vmul.f32 %v586, %v663
    %v802 = vmul.f32 %v586, %v667
    %v803 = vmul.f32 %v586, %v671
    %v804 = vmul.f32 %v586, %v675
    %v805 = vmul.f32 %v586, %v679
    %v806 = vmul.f32 %v586, %v683
    %v807 = vmul.f32 %v586, %v687
    %v808 = vmul.f32 %v586, %v691
    %v809 = vmul.f32 %v586, %v695
    %v810 = vmul.f32 %v586, %v699
    %v811 = vmul.f32 %v586, %v703
    %v812 = vmul.f32 %v586, %v707
    %v813 = vmul.f32 %v586, %v711
    %v814 = vmul.f32 %v586, %v715
    %v815 = vmul.f32 %v586, %v719
    %v816 = vadd.f32 %v508, %v752
    %v817 = vadd.f32 %v509, %v753
    %v818 = vadd.f32 %v510, %v754
    %v819 = vadd.f32 %v511, %v755
    %v820 = vadd.f32 %v512, %v756
    %v821 = vadd.f32 %v513, %v757
    %v822 = vadd.f32 %v514, %v758
    %v823 = vadd.f32 %v515, %v759
    %v824 = vadd.f32 %v516, %v760
    %v825 = vadd.f32 %v517, %v761
    %v826 = vadd.f32 %v518, %v762
    %v827 = vadd.f32 %v519, %v763
    %v828 = vadd.f32 %v520, %v764
    %v829 = vadd.f32 %v521, %v765
    %v830 = vadd.f32 %v522, %v766
    %v831 = vadd.f32 %v523, %v767
    %v832 = vadd.f32 %v524, %v768
    %v833 = vadd.f32 %v525, %v769
    %v834 = vadd.f32 %v526, %v770
    %v835 = vadd.f32 %v527, %v771
    %v836 = vadd.f32 %v528, %v772
    %v837 = vadd.f32 %v529, %v773
    %v838 = vadd.f32 %v530, %v774
    %v839 = vadd.f32 %v531, %v775
    %v840 = vadd.f32 %v532, %v776
    %v841 = vadd.f32 %v533, %v777
    %v842 = vadd.f32 %v534, %v778
    %v843 = vadd.f32 %v535, %v779
    %v844 = vadd.f32 %v536, %v780
    %v845 = vadd.f32 %v537, %v781
    %v846 = vadd.f32 %v538, %v782
    %v847 = vadd.f32 %v539, %v783
    %v848 = vadd.f32 %v540, %v784
    %v849 = vadd.f32 %v541, %v785
    %v850 = vadd.f32 %v542, %v786
    %v851 = vadd.f32 %v543, %v787
    %v852 = vadd.f32 %v544, %v788
    %v853 = vadd.f32 %v545, %v789
    %v854 = vadd.f32 %v546, %v790
    %v855 = vadd.f32 %v547, %v791
    %v856 = vadd.f32 %v548, %v792
    %v857 = vadd.f32 %v549, %v793
    %v858 = vadd.f32 %v550, %v794
    %v859 = vadd.f32 %v551, %v795
    %v860 = vadd.f32 %v552, %v796
    %v861 = vadd.f32 %v553, %v797
    %v862 = vadd.f32 %v554, %v798
    %v863 = vadd.f32 %v555, %v799
    %v864 = vadd.f32 %v556, %v800
    %v865 = vadd.f32 %v557, %v801
    %v866 = vadd.f32 %v558, %v802
    %v867 = vadd.f32 %v559, %v803
    %v868 = vadd.f32 %v560, %v804
    %v869 = vadd.f32 %v561, %v805
    %v870 = vadd.f32 %v562, %v806
    %v871 = vadd.f32 %v563, %v807
    %v872 = vadd.f32 %v564, %v808
    %v873 = vadd.f32 %v565, %v809
    %v874 = vadd.f32 %v566, %v810
    %v875 = vadd.f32 %v567, %v811
    %v876 = vadd.f32 %v568, %v812
    %v877 = vadd.f32 %v569, %v813
    %v878 = vadd.f32 %v570, %v814
    %v879 = vadd.f32 %v571, %v815
    %881 = vset.pattern.permute.xlu0 0
    %882 = vperm.xlu0 %881, %v17
    %v883 = vpop.permute.xlu0 %882
    %886 = vset.pattern.permute.xlu0 0
    %887 = vperm.xlu0 %886, %v18
    %v888 = vpop.permute.xlu0 %887
    %v890 = vadd.f32 %v816, %v883
    %v891 = vadd.f32 %v817, %v883
    %v892 = vadd.f32 %v818, %v883
    %v893 = vadd.f32 %v819, %v883
    %v894 = vadd.f32 %v820, %v883
    %v895 = vadd.f32 %v821, %v883
    %v896 = vadd.f32 %v822, %v883
    %v897 = vadd.f32 %v823, %v883
    %v898 = vadd.f32 %v824, %v883
    %v899 = vadd.f32 %v825, %v883
    %v900 = vadd.f32 %v826, %v883
    %v901 = vadd.f32 %v827, %v883
    %v902 = vadd.f32 %v828, %v883
    %v903 = vadd.f32 %v829, %v883
    %v904 = vadd.f32 %v830, %v883
    %v905 = vadd.f32 %v831, %v883
    %v906 = vadd.f32 %v832, %v883
    %v907 = vadd.f32 %v833, %v883
    %v908 = vadd.f32 %v834, %v883
    %v909 = vadd.f32 %v835, %v883
    %v910 = vadd.f32 %v836, %v883
    %v911 = vadd.f32 %v837, %v883
    %v912 = vadd.f32 %v838, %v883
    %v913 = vadd.f32 %v839, %v883
    %v914 = vadd.f32 %v840, %v883
    %v915 = vadd.f32 %v841, %v883
    %v916 = vadd.f32 %v842, %v883
    %v917 = vadd.f32 %v843, %v883
    %v918 = vadd.f32 %v844, %v883
    %v919 = vadd.f32 %v845, %v883
    %v920 = vadd.f32 %v846, %v883
    %v921 = vadd.f32 %v847, %v883
    %v922 = vadd.f32 %v848, %v888
    %v923 = vadd.f32 %v849, %v888
    %v924 = vadd.f32 %v850, %v888
    %v925 = vadd.f32 %v851, %v888
    %v926 = vadd.f32 %v852, %v888
    %v927 = vadd.f32 %v853, %v888
    %v928 = vadd.f32 %v854, %v888
    %v929 = vadd.f32 %v855, %v888
    %v930 = vadd.f32 %v856, %v888
    %v931 = vadd.f32 %v857, %v888
    %v932 = vadd.f32 %v858, %v888
    %v933 = vadd.f32 %v859, %v888
    %v934 = vadd.f32 %v860, %v888
    %v935 = vadd.f32 %v861, %v888
    %v936 = vadd.f32 %v862, %v888
    %v937 = vadd.f32 %v863, %v888
    %v938 = vadd.f32 %v864, %v888
    %v939 = vadd.f32 %v865, %v888
    %v940 = vadd.f32 %v866, %v888
    %v941 = vadd.f32 %v867, %v888
    %v942 = vadd.f32 %v868, %v888
    %v943 = vadd.f32 %v869, %v888
    %v944 = vadd.f32 %v870, %v888
    %v945 = vadd.f32 %v871, %v888
    %v946 = vadd.f32 %v872, %v888
    %v947 = vadd.f32 %v873, %v888
    %v948 = vadd.f32 %v874, %v888
    %v949 = vadd.f32 %v875, %v888
    %v950 = vadd.f32 %v876, %v888
    %v951 = vadd.f32 %v877, %v888
    %v952 = vadd.f32 %v878, %v888
    %v953 = vadd.f32 %v879, %v888
    %v954 = vmax.f32 %v890, 0.0
    %v955 = vmax.f32 %v891, 0.0
    %v956 = vmax.f32 %v892, 0.0
    %v957 = vmax.f32 %v893, 0.0
    %v958 = vmax.f32 %v894, 0.0
    %v959 = vmax.f32 %v895, 0.0
    %v960 = vmax.f32 %v896, 0.0
    %v961 = vmax.f32 %v897, 0.0
    %v962 = vmax.f32 %v898, 0.0
    %v963 = vmax.f32 %v899, 0.0
    %v964 = vmax.f32 %v900, 0.0
    %v965 = vmax.f32 %v901, 0.0
    %v966 = vmax.f32 %v902, 0.0
    %v967 = vmax.f32 %v903, 0.0
    %v968 = vmax.f32 %v904, 0.0
    %v969 = vmax.f32 %v905, 0.0
    %v970 = vmax.f32 %v906, 0.0
    %v971 = vmax.f32 %v907, 0.0
    %v972 = vmax.f32 %v908, 0.0
    %v973 = vmax.f32 %v909, 0.0
    %v974 = vmax.f32 %v910, 0.0
    %v975 = vmax.f32 %v911, 0.0
    %v976 = vmax.f32 %v912, 0.0
    %v977 = vmax.f32 %v913, 0.0
    %v978 = vmax.f32 %v914, 0.0
    %v979 = vmax.f32 %v915, 0.0
    %v980 = vmax.f32 %v916, 0.0
    %v981 = vmax.f32 %v917, 0.0
    %v982 = vmax.f32 %v918, 0.0
    %v983 = vmax.f32 %v919, 0.0
    %v984 = vmax.f32 %v920, 0.0
    %v985 = vmax.f32 %v921, 0.0
    %v986 = vmax.f32 %v922, 0.0
    %v987 = vmax.f32 %v923, 0.0
    %v988 = vmax.f32 %v924, 0.0
    %v989 = vmax.f32 %v925, 0.0
    %v990 = vmax.f32 %v926, 0.0
    %v991 = vmax.f32 %v927, 0.0
    %v992 = vmax.f32 %v928, 0.0
    %v993 = vmax.f32 %v929, 0.0
    %v994 = vmax.f32 %v930, 0.0
    %v995 = vmax.f32 %v931, 0.0
    %v996 = vmax.f32 %v932, 0.0
    %v997 = vmax.f32 %v933, 0.0
    %v998 = vmax.f32 %v934, 0.0
    %v999 = vmax.f32 %v935, 0.0
    %v1000 = vmax.f32 %v936, 0.0
    %v1001 = vmax.f32 %v937, 0.0
    %v1002 = vmax.f32 %v938, 0.0
    %v1003 = vmax.f32 %v939, 0.0
    %v1004 = vmax.f32 %v940, 0.0
    %v1005 = vmax.f32 %v941, 0.0
    %v1006 = vmax.f32 %v942, 0.0
    %v1007 = vmax.f32 %v943, 0.0
    %v1008 = vmax.f32 %v944, 0.0
    %v1009 = vmax.f32 %v945, 0.0
    %v1010 = vmax.f32 %v946, 0.0
    %v1011 = vmax.f32 %v947, 0.0
    %v1012 = vmax.f32 %v948, 0.0
    %v1013 = vmax.f32 %v949, 0.0
    %v1014 = vmax.f32 %v950, 0.0
    %v1015 = vmax.f32 %v951, 0.0
    %v1016 = vmax.f32 %v952, 0.0
    %v1017 = vmax.f32 %v953, 0.0
    %1018 = vst [vmem:[#allocation2] sm:$0xff] %v954
    %1019 = vst [vmem:[#allocation2 + $0x8] sm:$0xff] %v955
    %1020 = vst [vmem:[#allocation2 + $0x10] sm:$0xff] %v956
    %1021 = vst [vmem:[#allocation2 + $0x18] sm:$0xff] %v957
    %1022 = vst [vmem:[#allocation2 + $0x20] sm:$0xff] %v958
    %1023 = vst [vmem:[#allocation2 + $0x28] sm:$0xff] %v959
    %1024 = vst [vmem:[#allocation2 + $0x30] sm:$0xff] %v960
    %1025 = vst [vmem:[#allocation2 + $0x38] sm:$0xff] %v961
    %1026 = vst [vmem:[#allocation2 + $0x40] sm:$0xff] %v962
    %1027 = vst [vmem:[#allocation2 + $0x48] sm:$0xff] %v963
    %1028 = vst [vmem:[#allocation2 + $0x50] sm:$0xff] %v964
    %1029 = vst [vmem:[#allocation2 + $0x58] sm:$0xff] %v965
    %1030 = vst [vmem:[#allocation2 + $0x60] sm:$0xff] %v966
    %1031 = vst [vmem:[#allocation2 + $0x68] sm:$0xff] %v967
    %1032 = vst [vmem:[#allocation2 + $0x70] sm:$0xff] %v968
    %1033 = vst [vmem:[#allocation2 + $0x78] sm:$0xff] %v969
    %1034 = vst [vmem:[#allocation2 + $0x80] sm:$0xff] %v970
    %1035 = vst [vmem:[#allocation2 + $0x88] sm:$0xff] %v971
    %1036 = vst [vmem:[#allocation2 + $0x90] sm:$0xff] %v972
    %1037 = vst [vmem:[#allocation2 + $0x98] sm:$0xff] %v973
    %1038 = vst [vmem:[#allocation2 + $0xa0] sm:$0xff] %v974
    %1039 = vst [vmem:[#allocation2 + $0xa8] sm:$0xff] %v975
    %1040 = vst [vmem:[#allocation2 + $0xb0] sm:$0xff] %v976
    %1041 = vst [vmem:[#allocation2 + $0xb8] sm:$0xff] %v977
    %1042 = vst [vmem:[#allocation2 + $0xc0] sm:$0xff] %v978
    %1043 = vst [vmem:[#allocation2 + $0xc8] sm:$0xff] %v979
    %1044 = vst [vmem:[#allocation2 + $0xd0] sm:$0xff] %v980
    %1045 = vst [vmem:[#allocation2 + $0xd8] sm:$0xff] %v981
    %1046 = vst [vmem:[#allocation2 + $0xe0] sm:$0xff] %v982
    %1047 = vst [vmem:[#allocation2 + $0xe8] sm:$0xff] %v983
    %1048 = vst [vmem:[#allocation2 + $0xf0] sm:$0xff] %v984
    %1049 = vst [vmem:[#allocation2 + $0xf8] sm:$0xff] %v985
    %1050 = vst [vmem:[#allocation2 + $0x100] sm:$0xff] %v986
    %1051 = vst [vmem:[#allocation2 + $0x108] sm:$0xff] %v987
    %1052 = vst [vmem:[#allocation2 + $0x110] sm:$0xff] %v988
    %1053 = vst [vmem:[#allocation2 + $0x118] sm:$0xff] %v989
    %1054 = vst [vmem:[#allocation2 + $0x120] sm:$0xff] %v990
    %1055 = vst [vmem:[#allocation2 + $0x128] sm:$0xff] %v991
    %1056 = vst [vmem:[#allocation2 + $0x130] sm:$0xff] %v992
    %1057 = vst [vmem:[#allocation2 + $0x138] sm:$0xff] %v993
    %1058 = vst [vmem:[#allocation2 + $0x140] sm:$0xff] %v994
    %1059 = vst [vmem:[#allocation2 + $0x148] sm:$0xff] %v995
    %1060 = vst [vmem:[#allocation2 + $0x150] sm:$0xff] %v996
    %1061 = vst [vmem:[#allocation2 + $0x158] sm:$0xff] %v997
    %1062 = vst [vmem:[#allocation2 + $0x160] sm:$0xff] %v998
    %1063 = vst [vmem:[#allocation2 + $0x168] sm:$0xff] %v999
    %1064 = vst [vmem:[#allocation2 + $0x170] sm:$0xff] %v1000
    %1065 = vst [vmem:[#allocation2 + $0x178] sm:$0xff] %v1001
    %1066 = vst [vmem:[#allocation2 + $0x180] sm:$0xff] %v1002
    %1067 = vst [vmem:[#allocation2 + $0x188] sm:$0xff] %v1003
    %1068 = vst [vmem:[#allocation2 + $0x190] sm:$0xff] %v1004
    %1069 = vst [vmem:[#allocation2 + $0x198] sm:$0xff] %v1005
    %1070 = vst [vmem:[#allocation2 + $0x1a0] sm:$0xff] %v1006
    %1071 = vst [vmem:[#allocation2 + $0x1a8] sm:$0xff] %v1007
    %1072 = vst [vmem:[#allocation2 + $0x1b0] sm:$0xff] %v1008
    %1073 = vst [vmem:[#allocation2 + $0x1b8] sm:$0xff] %v1009
    %1074 = vst [vmem:[#allocation2 + $0x1c0] sm:$0xff] %v1010
    %1075 = vst [vmem:[#allocation2 + $0x1c8] sm:$0xff] %v1011
    %1076 = vst [vmem:[#allocation2 + $0x1d0] sm:$0xff] %v1012
    %1077 = vst [vmem:[#allocation2 + $0x1d8] sm:$0xff] %v1013
    %1078 = vst [vmem:[#allocation2 + $0x1e0] sm:$0xff] %v1014
    %1079 = vst [vmem:[#allocation2 + $0x1e8] sm:$0xff] %v1015
    %1080 = vst [vmem:[#allocation2 + $0x1f0] sm:$0xff] %v1016
    %1081 = vst [vmem:[#allocation2 + $0x1f8] sm:$0xff] %v1017
    // Predicated region
    $region14: #{tpu_custom_call.1} parent=1 // pred_check
      _
    $region15: #{tpu_custom_call.1} parent=1 // pred_check_branch
      %1083 = sbr.rel (0) target = $region17
    $region16: #{tpu_custom_call.1} parent=1 // pred_region
      %s1085 = ssub.s32 8192, 8192
      %1086 = vsyncadd [#allocation3], %s1085
      %s1087 = sshll.u32 [#allocation2], 4
      %s1088 = int_to_ptr.vmem [resolvable:$true] %s1087
      %1093 = dma.vmem_to_hbm [thread:$0]  %s1088, 8192, %s3, [#allocation3], 4096, 4096, 256
    $region17: #{tpu_custom_call.1} parent=1 // pred_fallthru
      _
    // Predicated region
    $region18: #{tpu_custom_call.1} parent=1 // pred_check
      _
    $region19: #{tpu_custom_call.1} parent=1 // pred_check_branch
      %1095 = sbr.rel (0) target = $region21
    $region20: #{tpu_custom_call.1} parent=1 // pred_region
      %1096 = dma.done [#allocation3], 8192
    $region21: #{tpu_custom_call.1} parent=1 // pred_fallthru
      _
    %1097 = vsyncpa [#allocation3], 1

</llo_original>
